<compile_context>
chip_gen: v6e
topology: v6e:2x2x1
jax: 0.10.0
libtpu: 0.0.40
codegen_flags: <defaults>
</compile_context>

<pallas_src>
import functools

import numpy as np
import jax
import jax.numpy as jnp
from jax import lax
from jax.experimental import pallas as pl
from jax.experimental.pallas import tpu as pltpu

_MIB = 1 << 20


def _round_up(x: int, m: int) -> int:
    return ((x + m - 1) // m) * m


def _itemsize(dt) -> int:
    return np.dtype(dt).itemsize


def _vmem_limit(est_bytes: int) -> int:
    # Never below the default scoped limit; never above v7x's 64 MiB physical.
    return int(max(32 * _MIB, min(2 * est_bytes, 64 * _MIB)))


# --------------------- kernel 1: projection + L2 normalize --------------------
def _project_normalize_kernel(feat_ref, w_ref, out_ref, *, mx_dtype):
    # f32 -> MXU dtype cast folded into the kernel: the feature matrix is read
    # from HBM exactly once, with no separate pad/astype pass in the wrapper.
    emb = jnp.dot(feat_ref[...].astype(mx_dtype), w_ref[...],
                  preferred_element_type=jnp.float32)
    inv = lax.rsqrt(jnp.sum(emb * emb, axis=-1, keepdims=True) + 1e-8)  # f32 EUP
    out_ref[...] = (emb * inv).astype(out_ref.dtype)


def _project_normalize(feats, w, *, tile_rows, mx_dtype):
    rows, d_in = feats.shape
    d = w.shape[1]
    # Rows tile: multiple of 8 sublanes, never bigger than needed. Feature dims
    # stay unpadded: a block's last dim equal to the full array dim is exempt
    # from the 128-divisibility rule.
    tr = min(_round_up(tile_rows, 8), _round_up(rows, 8))
    grid = (pl.cdiv(rows, tr),)

    vmem_est = (2 * tr * d_in * _itemsize(feats.dtype)      # double-buffered feats
                + 2 * d_in * d * _itemsize(w.dtype)         # resident weights (2 bufs)
                + 2 * tr * d * _itemsize(mx_dtype))         # double-buffered out
    return pl.pallas_call(
        functools.partial(_project_normalize_kernel, mx_dtype=mx_dtype),
        out_shape=jax.ShapeDtypeStruct((rows, d), mx_dtype),
        grid=grid,
        in_specs=[
            pl.BlockSpec((tr, d_in), lambda i: (i, 0)),
            # Weights are resident (constant block index).
            # TODO(synk): for very large projections (d_in*d weights tens of MiB)
            # K-tile the projection or single-buffer this spec so the doubled
            # weight buffer fits v7x's 64 MiB VMEM.
            pl.BlockSpec((d_in, d), lambda i: (0, 0)),
        ],
        out_specs=pl.BlockSpec((tr, d), lambda i: (i, 0)),
        compiler_params=pltpu.CompilerParams(
            dimension_semantics=("parallel",),
            vmem_limit_bytes=_vmem_limit(vmem_est)),
    )(feats, w)


# ----------------------- kernel 2: pairwise cosine scores ---------------------
def _similarity_kernel(img_ref, txt_ref, out_ref):
    # scores[i, j] = <img_i, txt_j>: contract both operands on their last axis,
    # no materialized transpose (keeps the XLU out of the loop).
    out_ref[...] = lax.dot_general(
        img_ref[...], txt_ref[...], (((1,), (1,)), ((), ())),
        preferred_element_type=jnp.float32).astype(out_ref.dtype)


def _similarity_kacc_kernel(img_ref, txt_ref, out_ref, acc_ref):
    @pl.when(pl.program_id(2) == 0)
    def _():
        acc_ref[...] = jnp.zeros_like(acc_ref)

    acc_ref[...] += lax.dot_general(
        img_ref[...], txt_ref[...], (((1,), (1,)), ((), ())),
        preferred_element_type=jnp.float32)

    @pl.when(pl.program_id(2) == pl.num_programs(2) - 1)
    def _():
        out_ref[...] = acc_ref[...].astype(out_ref.dtype)


def _pick_k_tile(d, threshold=4096):
    """Return a K tile (multiple of 128 dividing d) if D is big enough to need
    K-tiling on v7x's 64 MiB VMEM, else None (full-D slabs)."""
    if d <= threshold:
        return None
    for tk in (2048, 1024, 512, 256, 128):
        if d % tk == 0:
            return tk
    return None  # awkward D; fall back to full-D slabs


def _similarity(img_n, txt_n, *, tile_m, tile_n, out_dtype):
    m, d = img_n.shape
    n = txt_n.shape[0]
    # Output tile: sublane dim multiple of 8, lane dim multiple of 128
    # (lane-dense unmasked stores on interior tiles). Exact (m, n) out_shape
    # with a cdiv grid -> no wrapper-side slice pass over the score matrix.
    tm = min(_round_up(tile_m, 8), _round_up(m, 8))
    tn = min(_round_up(tile_n, 128), _round_up(n, 128))
    gm, gn = pl.cdiv(m, tm), pl.cdiv(n, tn)
    tk = _pick_k_tile(d)

    item = _itemsize(img_n.dtype)
    out_item = _itemsize(out_dtype)
    kd = tk if tk is not None else d
    vmem_est = (2 * (tm + tn) * kd * item          # double-buffered inputs
                + 2 * tm * tn * out_item           # double-buffered output
                + (tm * tn * 4 if tk is not None else 0))  # f32 accumulator

    # Put the longer output axis first: best megacore balance on v7x's two
    # TensorCores (no-op on v5e/v6e), and the leading operand stays resident
    # along the inner axis while the other side is re-streamed.
    m_first = gm >= gn

    if tk is None:
        if m_first:
            grid = (gm, gn)
            img_map = lambda i, j: (i, 0)
            txt_map = lambda i, j: (j, 0)
            out_map = lambda i, j: (i, j)
        else:
            grid = (gn, gm)
            img_map = lambda j, i: (i, 0)
            txt_map = lambda j, i: (j, 0)
            out_map = lambda j, i: (i, j)
        return pl.pallas_call(
            _similarity_kernel,
            out_shape=jax.ShapeDtypeStruct((m, n), out_dtype),
            grid=grid,
            in_specs=[pl.BlockSpec((tm, d), img_map),
                      pl.BlockSpec((tn, d), txt_map)],
            out_specs=pl.BlockSpec((tm, tn), out_map),
            compiler_params=pltpu.CompilerParams(
                dimension_semantics=("parallel", "parallel"),
                vmem_limit_bytes=_vmem_limit(vmem_est)),
        )(img_n, txt_n)

    # K-tiled path for very large D: reduction axis last, f32 VMEM accumulator.
    gk = pl.cdiv(d, tk)
    if m_first:
        grid = (gm, gn, gk)
        img_map = lambda i, j, k: (i, k)
        txt_map = lambda i, j, k: (j, k)
        out_map = lambda i, j, k: (i, j)
    else:
        grid = (gn, gm, gk)
        img_map = lambda j, i, k: (i, k)
        txt_map = lambda j, i, k: (j, k)
        out_map = lambda j, i, k: (i, j)
    return pl.pallas_call(
        _similarity_kacc_kernel,
        out_shape=jax.ShapeDtypeStruct((m, n), out_dtype),
        grid=grid,
        in_specs=[pl.BlockSpec((tm, tk), img_map),
                  pl.BlockSpec((tn, tk), txt_map)],
        out_specs=pl.BlockSpec((tm, tn), out_map),
        scratch_shapes=[pltpu.VMEM((tm, tn), jnp.float32)],
        compiler_params=pltpu.CompilerParams(
            dimension_semantics=("parallel", "parallel", "arbitrary"),
            vmem_limit_bytes=_vmem_limit(vmem_est)),
    )(img_n, txt_n)


# -------------------- fused single-tile (small m, n) kernel -------------------
def _fused_kernel(img_ref, txt_ref, wi_ref, wt_ref, out_ref, *, mx_dtype):
    img_emb = jnp.dot(img_ref[...].astype(mx_dtype), wi_ref[...],
                      preferred_element_type=jnp.float32)
    txt_emb = jnp.dot(txt_ref[...].astype(mx_dtype), wt_ref[...],
                      preferred_element_type=jnp.float32)
    img_n = img_emb * lax.rsqrt(jnp.sum(img_emb * img_emb, -1, keepdims=True) + 1e-8)
    txt_n = txt_emb * lax.rsqrt(jnp.sum(txt_emb * txt_emb, -1, keepdims=True) + 1e-8)
    out_ref[...] = lax.dot_general(
        img_n.astype(mx_dtype), txt_n.astype(mx_dtype),
        (((1,), (1,)), ((), ())),
        preferred_element_type=jnp.float32).astype(out_ref.dtype)


# --------------------------------- wrapper ------------------------------------
def pallas_score(img_feats, txt_feats, w_img, w_txt, *,
                 tile_m=512, tile_n=256, proj_tile_rows=512,
                 use_bf16=True, out_dtype=jnp.float32):
    """Return the (m, n) image-text cosine-similarity matrix, computed on-TPU.

    img_feats: (m, D_in)   txt_feats: (n, D_in)
    w_img, w_txt: (D_in, D) projection weights into the shared embedding space.
    """
    m, d_in = img_feats.shape
    n, d_in_t = txt_feats.shape
    d = w_img.shape[1]
    assert d_in == d_in_t and w_img.shape == (d_in, d) and w_txt.shape == (d_in, d)

    mx_dtype = jnp.bfloat16 if use_bf16 else jnp.float32
    # Weight matrices are small relative to the features; casting them once in
    # the wrapper is cheap. Feature matrices are cast inside the kernels.
    wi = w_img.astype(mx_dtype)
    wt = w_txt.astype(mx_dtype)

    # Small-problem fast path: everything fits one tile -> single fused launch,
    # no intermediate HBM traffic for the normalized embeddings.
    fits_budget = ((m + n) * d_in * 4 + 2 * d_in * d * 4
                   + (m + n) * d * 4 + m * n * 4) < 8 * _MIB
    if m <= tile_m and n <= tile_n and fits_budget:
        vmem_est = ((m + n) * d_in * _itemsize(img_feats.dtype)
                    + 2 * d_in * d * _itemsize(mx_dtype)
                    + m * n * _itemsize(out_dtype))
        return pl.pallas_call(
            functools.partial(_fused_kernel, mx_dtype=mx_dtype),
            out_shape=jax.ShapeDtypeStruct((m, n), out_dtype),
            compiler_params=pltpu.CompilerParams(
                vmem_limit_bytes=_vmem_limit(vmem_est)),
        )(img_feats, txt_feats, wi, wt)

    # General path: projection + normalization hoisted out of the pairwise loop
    # (done exactly once per row), then tiled pairwise similarity.
    img_n = _project_normalize(img_feats, wi, tile_rows=proj_tile_rows,
                               mx_dtype=mx_dtype)
    txt_n = _project_normalize(txt_feats, wt, tile_rows=proj_tile_rows,
                               mx_dtype=mx_dtype)
    return _similarity(img_n, txt_n, tile_m=tile_m, tile_n=tile_n,
                       out_dtype=out_dtype)


def _reference_score(img_feats, txt_feats, w_img, w_txt):
    img_emb = img_feats.astype(jnp.float32) @ w_img.astype(jnp.float32)
    txt_emb = txt_feats.astype(jnp.float32) @ w_txt.astype(jnp.float32)
    img_n = img_emb / jnp.sqrt(jnp.sum(img_emb**2, -1, keepdims=True) + 1e-8)
    txt_n = txt_emb / jnp.sqrt(jnp.sum(txt_emb**2, -1, keepdims=True) + 1e-8)
    return img_n @ txt_n.T


if __name__ == "__main__":
    key = jax.random.PRNGKey(0)
    (k_img, k_txt, k_wi, k_wt,
     k_img2, k_txt2, k_wi2, k_wt2) = jax.random.split(key, 8)

    # ---- tiny case (m images x n texts), exercises the fused single-tile path
    M, N, D_IN, D = 4, 8, 32, 32
    img_feats = jax.random.normal(k_img, (M, D_IN), dtype=jnp.float32)
    txt_feats = jax.random.normal(k_txt, (N, D_IN), dtype=jnp.float32)
    w_img = jax.random.normal(k_wi, (D_IN, D), dtype=jnp.float32) / jnp.sqrt(D_IN)
    w_txt = jax.random.normal(k_wt, (D_IN, D), dtype=jnp.float32) / jnp.sqrt(D_IN)

    ref = _reference_score(img_feats, txt_feats, w_img, w_txt)

    scores = pallas_score(img_feats, txt_feats, w_img, w_txt)  # bf16 MXU path
    jax.block_until_ready(scores)
    assert scores.shape == (M, N)
    assert jnp.allclose(scores, ref, atol=5e-2, rtol=5e-2)

    scores_f32 = pallas_score(img_feats, txt_feats, w_img, w_txt, use_bf16=False)
    jax.block_until_ready(scores_f32)
    assert jnp.allclose(scores_f32, ref, atol=2e-3, rtol=2e-3)

    # ---- multi-tile case: exercises the tiled projection + similarity path
    #      (cdiv grids with edge tiles, exact unpadded output, megacore split).
    M2, N2, D_IN2, D2 = 160, 144, 96, 64
    img2 = jax.random.normal(k_img2, (M2, D_IN2), dtype=jnp.float32)
    txt2 = jax.random.normal(k_txt2, (N2, D_IN2), dtype=jnp.float32)
    wi2 = jax.random.normal(k_wi2, (D_IN2, D2), dtype=jnp.float32) / jnp.sqrt(D_IN2)
    wt2 = jax.random.normal(k_wt2, (D_IN2, D2), dtype=jnp.float32) / jnp.sqrt(D_IN2)

    ref2 = _reference_score(img2, txt2, wi2, wt2)

    out2 = pallas_score(img2, txt2, wi2, wt2,
                        tile_m=64, tile_n=128, proj_tile_rows=64)
    jax.block_until_ready(out2)
    assert out2.shape == (M2, N2)
    assert jnp.allclose(out2, ref2, atol=5e-2, rtol=5e-2)

    out2_f32 = pallas_score(img2, txt2, wi2, wt2,
                            tile_m=64, tile_n=128, proj_tile_rows=64,
                            use_bf16=False)
    jax.block_until_ready(out2_f32)
    assert jnp.allclose(out2_f32, ref2, atol=2e-3, rtol=2e-3)

    # TODO(synk): video-frame extraction / image file IO / DataLoader batching
    # in the original module are host-side plumbing with no tensor compute and
    # are intentionally not translated.
    print("KERNEL_OK")
</pallas_src>

<mosaic_0001>
module attributes {stable_mosaic.version = 11 : i64} {
  func.func @_fused_kernel(%arg0: memref<4x32xf32, #tpu.memory_space<vmem>>, %arg1: memref<8x32xf32, #tpu.memory_space<vmem>>, %arg2: memref<32x32xbf16, #tpu.memory_space<vmem>>, %arg3: memref<32x32xbf16, #tpu.memory_space<vmem>>, %arg4: memref<4x8xf32, #tpu.memory_space<vmem>>) attributes {dimension_semantics = [], scalar_prefetch = 0 : i64, scratch_operands = 0 : i64, tpu.core_type = #tpu.core_type<tc>} {
    %c0 = arith.constant 0 : index
    %c0_0 = arith.constant 0 : index
    %0 = vector.load %arg0[%c0, %c0_0] : memref<4x32xf32, #tpu.memory_space<vmem>>, vector<4x32xf32>
    %1 = arith.truncf %0 : vector<4x32xf32> to vector<4x32xbf16>
    %c0_1 = arith.constant 0 : index
    %c0_2 = arith.constant 0 : index
    %2 = vector.load %arg2[%c0_1, %c0_2] : memref<32x32xbf16, #tpu.memory_space<vmem>>, vector<32x32xbf16>
    %cst = arith.constant dense<0.000000e+00> : vector<4x32xf32>
    %3 = tpu.matmul %1, %2, %cst {dimension_numbers = #tpu.dot_dimension_numbers<[1], [0], [0], [1], [0, 0, 1, 1], [], []>} : vector<4x32xbf16>, vector<32x32xbf16>, vector<4x32xf32> -> vector<4x32xf32>
    %c0_3 = arith.constant 0 : index
    %c0_4 = arith.constant 0 : index
    %4 = vector.load %arg1[%c0_3, %c0_4] : memref<8x32xf32, #tpu.memory_space<vmem>>, vector<8x32xf32>
    %5 = arith.truncf %4 : vector<8x32xf32> to vector<8x32xbf16>
    %c0_5 = arith.constant 0 : index
    %c0_6 = arith.constant 0 : index
    %6 = vector.load %arg3[%c0_5, %c0_6] : memref<32x32xbf16, #tpu.memory_space<vmem>>, vector<32x32xbf16>
    %cst_7 = arith.constant dense<0.000000e+00> : vector<8x32xf32>
    %7 = tpu.matmul %5, %6, %cst_7 {dimension_numbers = #tpu.dot_dimension_numbers<[1], [0], [0], [1], [0, 0, 1, 1], [], []>} : vector<8x32xbf16>, vector<32x32xbf16>, vector<8x32xf32> -> vector<8x32xf32>
    %8 = arith.mulf %3, %3 : vector<4x32xf32>
    %cst_8 = arith.constant dense<0.000000e+00> : vector<4xf32>
    %9 = vector.multi_reduction <add>, %8, %cst_8 [1] : vector<4x32xf32> to vector<4xf32>
    %10 = vector.shape_cast %9 : vector<4xf32> to vector<4x1xf32>
    %cst_9 = arith.constant 9.99999993E-9 : f32
    %11 = vector.broadcast %cst_9 : f32 to vector<4x1xf32>
    %12 = arith.addf %10, %11 : vector<4x1xf32>
    %13 = math.rsqrt %12 : vector<4x1xf32>
    %14 = vector.broadcast %13 : vector<4x1xf32> to vector<4x32xf32>
    %15 = arith.mulf %3, %14 : vector<4x32xf32>
    %16 = arith.mulf %7, %7 : vector<8x32xf32>
    %cst_10 = arith.constant dense<0.000000e+00> : vector<8xf32>
    %17 = vector.multi_reduction <add>, %16, %cst_10 [1] : vector<8x32xf32> to vector<8xf32>
    %18 = vector.shape_cast %17 : vector<8xf32> to vector<8x1xf32>
    %cst_11 = arith.constant 9.99999993E-9 : f32
    %19 = vector.broadcast %cst_11 : f32 to vector<8x1xf32>
    %20 = arith.addf %18, %19 : vector<8x1xf32>
    %21 = math.rsqrt %20 : vector<8x1xf32>
    %22 = vector.broadcast %21 : vector<8x1xf32> to vector<8x32xf32>
    %23 = arith.mulf %7, %22 : vector<8x32xf32>
    %24 = arith.truncf %15 : vector<4x32xf32> to vector<4x32xbf16>
    %25 = arith.truncf %23 : vector<8x32xf32> to vector<8x32xbf16>
    %cst_12 = arith.constant dense<0.000000e+00> : vector<4x8xf32>
    %26 = tpu.matmul %24, %25, %cst_12 {dimension_numbers = #tpu.dot_dimension_numbers<[1], [1], [0], [0], [0, 0, 1, 0], [], []>} : vector<4x32xbf16>, vector<8x32xbf16>, vector<4x8xf32> -> vector<4x8xf32>
    %c0_13 = arith.constant 0 : index
    %c0_14 = arith.constant 0 : index
    %27 = vector.load %arg4[%c0_13, %c0_14] : memref<4x8xf32, #tpu.memory_space<vmem>>, vector<4x8xf32>
    tpu.vector_store %arg4[%c0_13, %c0_14], %26 {strides = array<i32>} : memref<4x8xf32, #tpu.memory_space<vmem>>, vector<4x8xf32>,
    return
  }
}

</mosaic_0001>

<llo_original>
// kernel: tpu_custom_call.1
$region0: #{tpu_custom_call.1}
  #allocation0 [shape = 'u32[]', space=smem, size = 0x4, offset = 0x4, fixed_abs, tag = 'smem constant byte address 0x4 - core index']
  #allocation1 [shape = 'u32[144,128]{1,0:T(1,128)}', space=vmem, size = 0x12000, scoped, tag = 'internal scratch']
  %s0 = inlined_call_operand.hbm [shape: f32[4,32], index: 0, kind: input, shape index: {}]
  %s1 = inlined_call_operand.hbm [shape: f32[8,32], index: 1, kind: input, shape index: {}]
  %s2 = inlined_call_operand.hbm [shape: bf16[32,32], index: 2, kind: input, shape index: {}]
  %s3 = inlined_call_operand.hbm [shape: bf16[32,32], index: 3, kind: input, shape index: {}]
  %s4 = inlined_call_operand.hbm [shape: f32[4,8], index: 4, kind: output, shape index: {}]
  %s5 = sld [smem:[#allocation0]]
  $region42: #{tpu_custom_call.1} parent=0
    _
  %s7 = ssub.s32 1, %s5
  %s8 = scalar_select 0, %s7, %s5
  $region1: #{tpu_custom_call.1} parent=0
    #allocation2 [shape = 'u8[2048]{0}', space=vmem, size = 0x800, scoped, tag = 'input window, operand 0, single buffered']
    #allocation3 [shape = 's32[1]{0}', space=sflag, size = 0x4, scoped, tag = 'scoped memory for tpu_custom_call.1']
    #allocation4 [shape = 's32[1]{0}', space=sflag, size = 0x4, scoped, tag = 'scoped memory for tpu_custom_call.1']
    #allocation5 [shape = 'u8[4096]{0}', space=vmem, size = 0x1000, scoped, tag = 'input window, operand 1, single buffered']
    #allocation6 [shape = 's32[1]{0}', space=sflag, size = 0x4, scoped, tag = 'scoped memory for tpu_custom_call.1']
    #allocation7 [shape = 'u8[8192]{0}', space=vmem, size = 0x2000, scoped, tag = 'input window, operand 2, single buffered']
    #allocation8 [shape = 'u8[8192]{0}', space=vmem, size = 0x2000, scoped, tag = 'input window, operand 3, single buffered']
    #allocation9 [shape = 's32[1]{0}', space=sflag, size = 0x4, scoped, tag = 'scoped memory for tpu_custom_call.1']
    #allocation10 [shape = 'u8[2048]{0}', space=vmem, size = 0x800, scoped, tag = 'output window, operand 0, single buffered']
    %9 = vsyncpa [#allocation3], 0
    %10 = vsyncpa [#allocation6], 0
    %11 = vsyncpa [#allocation9], 0
    %12 = vsyncpa [#allocation4], 0
    // Predicated region
    $region2: #{tpu_custom_call.1} parent=1 // pred_check
      _
    $region3: #{tpu_custom_call.1} parent=1 // pred_check_branch
      %14 = sbr.rel (0) target = $region5
    $region4: #{tpu_custom_call.1} parent=1 // pred_region
      %s16 = ssub.s32 64, 64
      %17 = vsyncadd [#allocation3], %s16
      %s19 = sshll.u32 [#allocation2], 4
      %s20 = int_to_ptr.vmem [resolvable:$true] %s19
      %22 = dma.hbm_to_vmem [thread:$0]  %s0, 64, %s20, [#allocation3]
    $region5: #{tpu_custom_call.1} parent=1 // pred_fallthru
      _
    // Predicated region
    $region6: #{tpu_custom_call.1} parent=1 // pred_check
      _
    $region7: #{tpu_custom_call.1} parent=1 // pred_check_branch
      %24 = sbr.rel (0) target = $region9
    $region8: #{tpu_custom_call.1} parent=1 // pred_region
      %s26 = ssub.s32 128, 128
      %27 = vsyncadd [#allocation6], %s26
      %s29 = sshll.u32 [#allocation5], 4
      %s30 = int_to_ptr.vmem [resolvable:$true] %s29
      %32 = dma.hbm_to_vmem [thread:$0]  %s1, 128, %s30, [#allocation6]
    $region9: #{tpu_custom_call.1} parent=1 // pred_fallthru
      _
    // Predicated region
    $region10: #{tpu_custom_call.1} parent=1 // pred_check
      _
    $region11: #{tpu_custom_call.1} parent=1 // pred_check_branch
      %34 = sbr.rel (0) target = $region13
    $region12: #{tpu_custom_call.1} parent=1 // pred_region
      %s36 = ssub.s32 256, 256
      %37 = vsyncadd [#allocation6], %s36
      %s38 = sshll.u32 [#allocation7], 4
      %s39 = int_to_ptr.vmem [resolvable:$true] %s38
      %44 = dma.hbm_to_vmem [thread:$0]  %s2, 256, %s39, [#allocation6], 64, 64, 4
    $region13: #{tpu_custom_call.1} parent=1 // pred_fallthru
      _
    // Predicated region
    $region14: #{tpu_custom_call.1} parent=1 // pred_check
      _
    $region15: #{tpu_custom_call.1} parent=1 // pred_check_branch
      %46 = sbr.rel (0) target = $region17
    $region16: #{tpu_custom_call.1} parent=1 // pred_region
      %s48 = ssub.s32 256, 256
      %49 = vsyncadd [#allocation9], %s48
      %s50 = sshll.u32 [#allocation8], 4
      %s51 = int_to_ptr.vmem [resolvable:$true] %s50
      %56 = dma.hbm_to_vmem [thread:$0]  %s3, 256, %s51, [#allocation9], 64, 64, 4
    $region17: #{tpu_custom_call.1} parent=1 // pred_fallthru
      _
    // Predicated region
    $region18: #{tpu_custom_call.1} parent=1 // pred_check
      _
    $region19: #{tpu_custom_call.1} parent=1 // pred_check_branch
      %58 = sbr.rel (0) target = $region21
    $region20: #{tpu_custom_call.1} parent=1 // pred_region
      %59 = dma.done [#allocation3], 64
    $region21: #{tpu_custom_call.1} parent=1 // pred_fallthru
      _
    // Predicated region
    $region22: #{tpu_custom_call.1} parent=1 // pred_check
      _
    $region23: #{tpu_custom_call.1} parent=1 // pred_check_branch
      %61 = sbr.rel (0) target = $region25
    $region24: #{tpu_custom_call.1} parent=1 // pred_region
      %62 = dma.done [#allocation6], 128
    $region25: #{tpu_custom_call.1} parent=1 // pred_fallthru
      _
    // Predicated region
    $region26: #{tpu_custom_call.1} parent=1 // pred_check
      _
    $region27: #{tpu_custom_call.1} parent=1 // pred_check_branch
      %64 = sbr.rel (0) target = $region29
    $region28: #{tpu_custom_call.1} parent=1 // pred_region
      %65 = dma.done [#allocation6], 256
    $region29: #{tpu_custom_call.1} parent=1 // pred_fallthru
      _
    // Predicated region
    $region30: #{tpu_custom_call.1} parent=1 // pred_check
      _
    $region31: #{tpu_custom_call.1} parent=1 // pred_check_branch
      %67 = sbr.rel (0) target = $region33
    $region32: #{tpu_custom_call.1} parent=1 // pred_region
      %68 = dma.done [#allocation9], 256
    $region33: #{tpu_custom_call.1} parent=1 // pred_fallthru
      _
    %v70 = vld [vmem:[#allocation2] sm:$0xf]
    %v71 = vpack.c.bf16 %v70, %v70
    %v72 = vld [vmem:[#allocation7] sm:$0xf]
    %v73 = vld [vmem:[#allocation7 + $0x4] sm:$0xf]
    %v74 = vld [vmem:[#allocation7 + $0x8] sm:$0xf]
    %v75 = vld [vmem:[#allocation7 + $0xc] sm:$0xf]
    %v80 = vunpack.c.l.b16 %v72
    %v81 = vunpack.c.l.b16 %v73
    %v82 = vunpack.c.l.b16 %v74
    %v83 = vunpack.c.l.b16 %v75
    %v84 = vpack.c.b16 %v81, %v80
    %v85 = vpack.c.b16 %v83, %v82
    %vm88 = vcmask 261120
    %v90 = vsel %vm88, %v71, 0
    %92 = vmatprep.subr.bf16.mxu0 0
    %93 = vmatpush1.bf16.msra.mxu0 0
    %94 = vmatprep.subr.bf16.mxu0 0
    %95 = vmatpush1.bf16.msra.mxu0 0
    %96 = vmatprep.subr.bf16.mxu0 0
    %97 = vmatpush1.bf16.msra.mxu0 0
    %98 = vmatprep.subr.bf16.mxu0 0
    %99 = vmatpush1.bf16.msra.mxu0 0
    %100 = vmatprep.subr.bf16.mxu0 0
    %101 = vmatpush1.bf16.msra.mxu0 0
    %102 = vmatprep.subr.bf16.mxu0 0
    %103 = vmatpush1.bf16.msra.mxu0 0
    %104 = vmatprep.subr.bf16.mxu0 0
    %105 = vmatpush1.bf16.msra.mxu0 %v85
    %106 = vmatprep.subr.bf16.mxu0 0
    %107 = vmatpush1.bf16.msra.mxu0 %v84
    %108 = vmatprep.subr.bf16.mxu0 0
    %109 = vmatpush2.bf16.msra.mxu0 0
    %110 = vmatprep.subr.bf16.mxu0 0
    %111 = vmatpush2.bf16.msra.mxu0 0
    %112 = vmatprep.subr.bf16.mxu0 0
    %113 = vmatpush2.bf16.msra.mxu0 0
    %114 = vmatprep.subr.bf16.mxu0 0
    %115 = vmatpush2.bf16.msra.mxu0 0
    %116 = vmatprep.subr.bf16.mxu0 0
    %117 = vmatpush2.bf16.msra.mxu0 0
    %118 = vmatprep.subr.bf16.mxu0 0
    %119 = vmatpush2.bf16.msra.mxu0 0
    %120 = vmatprep.subr.bf16.mxu0 0
    %121 = vmatpush2.bf16.msra.mxu0 0
    %122 = vmatprep.subr.bf16.mxu0 0
    %123 = vmatpush2.bf16.msra.mxu0 0
    %124 = vmatprep.mubr.bf16.mxu0 0
    %125 = vmatmul.mubr.bf16.gmra.mxu0 %v90
    %v126 = vpop.f32.mrf.mxu0
    %v127 = vadd.f32 0.0, %v126
    %v128 = vpop.f32.mrf.mxu0
    %v129 = vpop.f32.mrf.mxu0
    %v130 = vpop.f32.mrf.mxu0
    %131 = vdwg.mxu0
    %v132 = vld [vmem:[#allocation5] sm:$0xff]
    %v133 = vpack.c.bf16 %v132, %v132
    %v134 = vld [vmem:[#allocation8] sm:$0xf]
    %v135 = vld [vmem:[#allocation8 + $0x4] sm:$0xf]
    %v136 = vld [vmem:[#allocation8 + $0x8] sm:$0xf]
    %v137 = vld [vmem:[#allocation8 + $0xc] sm:$0xf]
    %v142 = vunpack.c.l.b16 %v134
    %v143 = vunpack.c.l.b16 %v135
    %v144 = vunpack.c.l.b16 %v136
    %v145 = vunpack.c.l.b16 %v137
    %v146 = vpack.c.b16 %v143, %v142
    %v147 = vpack.c.b16 %v145, %v144
    %v151 = vsel %vm88, %v133, 0
    %153 = vmatprep.subr.bf16.mxu0 0
    %154 = vmatpush1.bf16.msra.mxu0 0
    %155 = vmatprep.subr.bf16.mxu0 0
    %156 = vmatpush1.bf16.msra.mxu0 0
    %157 = vmatprep.subr.bf16.mxu0 0
    %158 = vmatpush1.bf16.msra.mxu0 0
    %159 = vmatprep.subr.bf16.mxu0 0
    %160 = vmatpush1.bf16.msra.mxu0 0
    %161 = vmatprep.subr.bf16.mxu0 0
    %162 = vmatpush1.bf16.msra.mxu0 0
    %163 = vmatprep.subr.bf16.mxu0 0
    %164 = vmatpush1.bf16.msra.mxu0 0
    %165 = vmatprep.subr.bf16.mxu0 0
    %166 = vmatpush1.bf16.msra.mxu0 %v147
    %167 = vmatprep.subr.bf16.mxu0 0
    %168 = vmatpush1.bf16.msra.mxu0 %v146
    %169 = vmatprep.subr.bf16.mxu0 0
    %170 = vmatpush2.bf16.msra.mxu0 0
    %171 = vmatprep.subr.bf16.mxu0 0
    %172 = vmatpush2.bf16.msra.mxu0 0
    %173 = vmatprep.subr.bf16.mxu0 0
    %174 = vmatpush2.bf16.msra.mxu0 0
    %175 = vmatprep.subr.bf16.mxu0 0
    %176 = vmatpush2.bf16.msra.mxu0 0
    %177 = vmatprep.subr.bf16.mxu0 0
    %178 = vmatpush2.bf16.msra.mxu0 0
    %179 = vmatprep.subr.bf16.mxu0 0
    %180 = vmatpush2.bf16.msra.mxu0 0
    %181 = vmatprep.subr.bf16.mxu0 0
    %182 = vmatpush2.bf16.msra.mxu0 0
    %183 = vmatprep.subr.bf16.mxu0 0
    %184 = vmatpush2.bf16.msra.mxu0 0
    %185 = vmatprep.mubr.bf16.mxu0 0
    %186 = vmatmul.mubr.bf16.gmra.mxu0 %v151
    %v187 = vpop.f32.mrf.mxu0
    %v188 = vadd.f32 0.0, %v187
    %v189 = vpop.f32.mrf.mxu0
    %v190 = vpop.f32.mrf.mxu0
    %v191 = vpop.f32.mrf.mxu0
    %192 = vdwg.mxu0
    %v193 = vmul.f32 %v127, %v127
    %vm194 = vcmask 257024
    %v195 = vsel %vm194, %v193, 0.0
    %196 = vadd.xlane.f32.xlu0 %v195
    %v197 = vpop.xlane.xlu0 %196
    %v198 = vadd.f32 %v197, 1e-08
    %v199 = vrsqrt.pop %v198
    %v200 = vmul.f32 %v127, %v199
    %v201 = vmul.f32 %v188, %v188
    %v202 = vsel %vm88, %v201, 0.0
    %203 = vadd.xlane.f32.xlu0 %v202
    %v204 = vpop.xlane.xlu0 %203
    %v205 = vadd.f32 %v204, 1e-08
    %v206 = vrsqrt.pop %v205
    %v207 = vmul.f32 %v188, %v206
    %v208 = vpack.c.bf16 %v200, %v200
    %v209 = vpack.c.bf16 %v207, %v207
    %v211 = vsel %vm88, %v208, 0
    %v214 = vsel %vm88, %v209, 0
    %216 = vmatprep.subr.bf16.mxu0 0
    %217 = vmatpush1.bf16.xpose.msra.mxu0 0
    %218 = vmatprep.subr.bf16.mxu0 0
    %219 = vmatpush1.bf16.xpose.msra.mxu0 0
    %220 = vmatprep.subr.bf16.mxu0 0
    %221 = vmatpush1.bf16.xpose.msra.mxu0 0
    %222 = vmatprep.subr.bf16.mxu0 0
    %223 = vmatpush1.bf16.xpose.msra.mxu0 0
    %224 = vmatprep.subr.bf16.mxu0 0
    %225 = vmatpush1.bf16.xpose.msra.mxu0 0
    %226 = vmatprep.subr.bf16.mxu0 0
    %227 = vmatpush1.bf16.xpose.msra.mxu0 0
    %228 = vmatprep.subr.bf16.mxu0 0
    %229 = vmatpush1.bf16.xpose.msra.mxu0 0
    %230 = vmatprep.subr.bf16.mxu0 0
    %231 = vmatpush1.bf16.xpose.msra.mxu0 %v214
    %232 = vmatprep.subr.bf16.mxu0 0
    %233 = vmatpush2.bf16.xpose.msra.mxu0 0
    %234 = vmatprep.subr.bf16.mxu0 0
    %235 = vmatpush2.bf16.xpose.msra.mxu0 0
    %236 = vmatprep.subr.bf16.mxu0 0
    %237 = vmatpush2.bf16.xpose.msra.mxu0 0
    %238 = vmatprep.subr.bf16.mxu0 0
    %239 = vmatpush2.bf16.xpose.msra.mxu0 0
    %240 = vmatprep.subr.bf16.mxu0 0
    %241 = vmatpush2.bf16.xpose.msra.mxu0 0
    %242 = vmatprep.subr.bf16.mxu0 0
    %243 = vmatpush2.bf16.xpose.msra.mxu0 0
    %244 = vmatprep.subr.bf16.mxu0 0
    %245 = vmatpush2.bf16.xpose.msra.mxu0 0
    %246 = vmatprep.subr.bf16.mxu0 0
    %247 = vmatpush2.bf16.xpose.msra.mxu0 0
    %248 = vmatprep.mubr.bf16.mxu0 0
    %249 = vmatmul.mubr.bf16.gmra.mxu0 %v211
    %v250 = vpop.f32.mrf.mxu0
    %v251 = vadd.f32 0.0, %v250
    %v252 = vpop.f32.mrf.mxu0
    %v253 = vpop.f32.mrf.mxu0
    %v254 = vpop.f32.mrf.mxu0
    %255 = vdwg.mxu0
    %vm256 = vcmask 60416
    %257 = vst.msk [vmem:[#allocation10] sm:$0xf] %vm256, %v251
    // Predicated region
    $region34: #{tpu_custom_call.1} parent=1 // pred_check
      _
    $region35: #{tpu_custom_call.1} parent=1 // pred_check_branch
      %259 = sbr.rel (0) target = $region37
    $region36: #{tpu_custom_call.1} parent=1 // pred_region
      %s261 = ssub.s32 64, 64
      %262 = vsyncadd [#allocation4], %s261
      %s264 = sshll.u32 [#allocation10], 4
      %s265 = int_to_ptr.vmem [resolvable:$true] %s264
      %267 = dma.vmem_to_hbm [thread:$0]  %s265, 64, %s4, [#allocation4]
    $region37: #{tpu_custom_call.1} parent=1 // pred_fallthru
      _
    // Predicated region
    $region38: #{tpu_custom_call.1} parent=1 // pred_check
      _
    $region39: #{tpu_custom_call.1} parent=1 // pred_check_branch
      %269 = sbr.rel (0) target = $region41
    $region40: #{tpu_custom_call.1} parent=1 // pred_region
      %270 = dma.done [#allocation4], 64
    $region41: #{tpu_custom_call.1} parent=1 // pred_fallthru
      _
    %271 = vsyncpa [#allocation3], 1
    %272 = vsyncpa [#allocation6], 1
    %273 = vsyncpa [#allocation9], 1
    %274 = vsyncpa [#allocation4], 1

</llo_original>
